<compile_context>
chip_gen: v5e
topology: v5e:2x2
jax: 0.10.0
libtpu: 0.0.40
codegen_flags: <defaults>
</compile_context>

<pallas_src>
import functools
import numpy as np

import jax
import jax.numpy as jnp
from jax.experimental import pallas as pl
from jax.experimental.pallas import tpu as pltpu

_LANE = 128
_SUBLANE = 8
_COMPUTE_DTYPE = jnp.bfloat16  # x / W1 / W2 stream dtype; accumulation is f32.


def _round_up(x, m):
    return ((x + m - 1) // m) * m


@functools.lru_cache(maxsize=1)
def _vmem_capacity_bytes():
    """Per-core VMEM capacity (bytes); conservative fallback if the query fails."""
    try:
        return int(pltpu.get_tpu_info().vmem_capacity_bytes)
    except Exception:
        return 64 * 1024 * 1024  # v7x per-TC VMEM; safe lower bound everywhere


def _vmem_budget_bytes():
    return int(0.70 * _vmem_capacity_bytes())


def _mlp_kernel(x_ref, w1_ref, b1_ref, w2_ref, b2_ref, o_ref):
    # MXU #1: bf16 x @ bf16 W1 with f32 accumulation.
    h = jnp.dot(x_ref[...], w1_ref[...], preferred_element_type=jnp.float32)
    # Bias + ReLU in f32 on the VPU (v5e has no bf16 VPU).
    h = jnp.maximum(h + b1_ref[...], 0.0)
    # MXU #2: cast activations to bf16, lane-dense padded D_out, f32 accumulation.
    o = jnp.dot(h.astype(w2_ref.dtype), w2_ref[...],
                preferred_element_type=jnp.float32)
    o_ref[...] = (o + b2_ref[...]).astype(o_ref.dtype)


def _pick_tm(n, d_in, hidden, d_out_p, budget):
    """Largest batch tile whose tiles + (double-buffered) resident weights fit."""
    in_b = jnp.dtype(_COMPUTE_DTYPE).itemsize  # bf16 x / W1 / W2
    f32_b = 4                                  # biases, accumulators, output
    # Pallas allocates 2 VMEM buffers per input BlockSpec even with a constant
    # index_map, so the resident weights are counted twice.
    weight_bytes = 2 * ((d_in * hidden + hidden * d_out_p) * in_b
                        + (hidden + d_out_p) * f32_b)
    n_ceil = _round_up(max(n, 1), _SUBLANE)
    tm = _SUBLANE
    for cand in (2048, 1024, 512, 256, 128, 64, 32, 16, 8):
        if cand > n_ceil:
            continue
        tile_bytes = (2 * cand * d_in * in_b            # double-buffered x tile
                      + 2 * cand * d_out_p * f32_b      # double-buffered out tile
                      + cand * hidden * (f32_b + in_b)  # f32 h + bf16 copy
                      + cand * d_out_p * f32_b)         # f32 pre-bias result
        if weight_bytes + tile_bytes <= budget:
            tm = cand
            break
    # v7x megacore: the batch axis is the only "parallel" grid axis; a 1-step grid
    # leaves one of the two TensorCores idle.  Halve the tile (keeping it a
    # multiple of 8) until there are >= 2 steps.  No effect on single-TC v5e/v6e.
    while tm >= 2 * _SUBLANE and _round_up(n_ceil, tm) // tm < 2:
        tm //= 2
    return max(tm, _SUBLANE)


@functools.partial(jax.jit, static_argnames=("output_shape",))
def mlp_forward(x, w1, b1, w2, b2, *, output_shape):
    """Pallas-backed MLP forward: relu(x @ W1 + b1) @ W2 + b2.

    x: (N, *input_shape) -> flattened to (N, input_dim)
    w1: (input_dim, hidden), b1: (1, hidden)
    w2: (hidden, output_dim), b2: (1, output_dim)
    returns: (N, *output_shape), float32
    """
    n = x.shape[0]
    x2d = x.reshape(n, -1)
    d_in = x2d.shape[1]
    hidden = w1.shape[1]
    d_out = w2.shape[1]

    # Lane-dense output: pad W2/b2 columns (zeros) so the output last dim is a
    # multiple of 128 (full vst, no masked stores); sliced off after the call.
    d_out_p = _round_up(d_out, _LANE)
    if d_out_p != d_out:
        w2 = jnp.pad(w2, ((0, 0), (0, d_out_p - d_out)))
        b2 = jnp.pad(b2, ((0, 0), (0, d_out_p - d_out)))

    # bf16 the streamed / MXU operands; keep the epilogue (biases) in f32.
    x2d = x2d.astype(_COMPUTE_DTYPE)
    w1 = w1.astype(_COMPUTE_DTYPE)
    w2 = w2.astype(_COMPUTE_DTYPE)
    b1 = b1.astype(jnp.float32)
    b2 = b2.astype(jnp.float32)
    out_dtype = jnp.float32

    budget = _vmem_budget_bytes()
    tm = _pick_tm(n, d_in, hidden, d_out_p, budget)

    # Pad the batch up to a multiple of the tile; padded rows are sliced off.
    n_p = _round_up(n, tm)
    if n_p != n:
        x2d = jnp.pad(x2d, ((0, n_p - n), (0, 0)))

    in_b = jnp.dtype(_COMPUTE_DTYPE).itemsize
    cost = pl.CostEstimate(
        flops=2 * n_p * d_in * hidden + 2 * n_p * hidden * d_out_p,
        transcendentals=0,
        bytes_accessed=(in_b * (n_p * d_in + d_in * hidden + hidden * d_out_p)
                        + 4 * (hidden + d_out_p + n_p * d_out_p)),
    )

    vmem_limit = min(_vmem_capacity_bytes(), budget + (16 << 20))

    out = pl.pallas_call(
        _mlp_kernel,
        out_shape=jax.ShapeDtypeStruct((n_p, d_out_p), out_dtype),
        grid_spec=pltpu.PrefetchScalarGridSpec(
            num_scalar_prefetch=0,
            grid=(n_p // tm,),
            in_specs=[
                pl.BlockSpec((tm, d_in), lambda i: (i, 0)),         # x: tiled over batch (pipelined)
                pl.BlockSpec((d_in, hidden), lambda i: (0, 0)),     # W1: resident across grid
                pl.BlockSpec((1, hidden), lambda i: (0, 0)),        # b1: resident
                pl.BlockSpec((hidden, d_out_p), lambda i: (0, 0)),  # W2: resident
                pl.BlockSpec((1, d_out_p), lambda i: (0, 0)),       # b2: resident
            ],
            out_specs=pl.BlockSpec((tm, d_out_p), lambda i: (i, 0)),
        ),
        compiler_params=pltpu.CompilerParams(
            dimension_semantics=("parallel",),  # megacore-shardable batch axis (v7x: 2 TCs)
            vmem_limit_bytes=vmem_limit,
        ),
        cost_estimate=cost,
    )(x2d, w1, b1, w2, b2)

    out = out[:n, :d_out]
    return out.reshape((-1, *output_shape))


def init_mlp_params(key, input_shape, output_shape, hidden=(128,), dtype=jnp.float32):
    """Deterministic init matching the module's layer shapes (PyTorch-style uniform)."""
    input_dim = int(np.prod(input_shape))
    output_dim = int(np.prod(output_shape))
    if not hidden:
        hidden = []
    layers = [input_dim, *hidden, output_dim]

    params = []
    for i in range(len(layers) - 1):
        fan_in, fan_out = layers[i], layers[i + 1]
        key, kw, kb = jax.random.split(key, 3)
        bound = 1.0 / np.sqrt(fan_in)
        w = jax.random.uniform(kw, (fan_in, fan_out), dtype, -bound, bound)
        b = jax.random.uniform(kb, (1, fan_out), dtype, -bound, bound)
        params.append((w, b))
    return params


if __name__ == "__main__":
    # Small shapes consistent with the module:
    #   input_shape = (4, 16, 16) -> input_dim = 1024
    #   hidden      = (128,)
    #   output_shape = (8,)       -> output_dim = 8
    input_shape = (4, 16, 16)
    output_shape = (8,)
    hidden = (128,)
    batch = 2

    key = jax.random.PRNGKey(0)
    key, kx = jax.random.split(key)
    x = jax.random.normal(kx, (batch, *input_shape), dtype=jnp.float32)

    (w1, b1), (w2, b2) = init_mlp_params(key, input_shape, output_shape, hidden)

    y = mlp_forward(x, w1, b1, w2, b2, output_shape=output_shape)
    y = jax.block_until_ready(y)
    assert y.shape == (batch, *output_shape), y.shape

    # Reference (a): bf16-quantized inputs, f32 math — matches kernel quantization.
    x2d = x.reshape(batch, -1)
    xq = x2d.astype(jnp.bfloat16).astype(jnp.float32)
    w1q = w1.astype(jnp.bfloat16).astype(jnp.float32)
    w2q = w2.astype(jnp.bfloat16).astype(jnp.float32)
    hq = jnp.maximum(xq @ w1q + b1, 0.0).astype(jnp.bfloat16).astype(jnp.float32)
    ref_q = (hq @ w2q + b2).reshape((-1, *output_shape))
    np.testing.assert_allclose(np.asarray(y), np.asarray(ref_q), rtol=2e-2, atol=2e-2)

    # Reference (b): full-f32 module math — only bf16 input-quantization error remains.
    ref_f32 = (jnp.maximum(x2d @ w1 + b1, 0.0) @ w2 + b2).reshape((-1, *output_shape))
    np.testing.assert_allclose(np.asarray(y), np.asarray(ref_f32), rtol=5e-2, atol=5e-2)

    print("KERNEL_OK")
</pallas_src>

<mosaic_0001>
module attributes {stable_mosaic.version = 11 : i64} {
  func.func @_mlp_kernel(%arg0: i32, %arg1: memref<8x1024xbf16, #tpu.memory_space<vmem>>, %arg2: memref<1024x128xbf16, #tpu.memory_space<vmem>>, %arg3: memref<1x128xf32, #tpu.memory_space<vmem>>, %arg4: memref<128x128xbf16, #tpu.memory_space<vmem>>, %arg5: memref<1x128xf32, #tpu.memory_space<vmem>>, %arg6: memref<8x128xf32, #tpu.memory_space<vmem>>) attributes {dimension_semantics = [#tpu.dimension_semantics<parallel>], iteration_bounds = array<i64: 1>, scalar_prefetch = 0 : i64, scratch_operands = 0 : i64, tpu.core_type = #tpu.core_type<tc>, window_params = [{transform_indices = @transform_0, window_bounds = array<i64: 8, 1024>}, {pipeline_mode = #tpu.pipeline_mode<synchronous>, transform_indices = @transform_1, window_bounds = array<i64: 1024, 128>}, {pipeline_mode = #tpu.pipeline_mode<synchronous>, transform_indices = @transform_2, window_bounds = array<i64: 1, 128>}, {pipeline_mode = #tpu.pipeline_mode<synchronous>, transform_indices = @transform_3, window_bounds = array<i64: 128, 128>}, {pipeline_mode = #tpu.pipeline_mode<synchronous>, transform_indices = @transform_4, window_bounds = array<i64: 1, 128>}, {transform_indices = @transform_5, window_bounds = array<i64: 8, 128>}]} {
    %c0 = arith.constant 0 : index
    %c0_0 = arith.constant 0 : index
    %0 = vector.load %arg1[%c0, %c0_0] : memref<8x1024xbf16, #tpu.memory_space<vmem>>, vector<8x1024xbf16>
    %c0_1 = arith.constant 0 : index
    %c0_2 = arith.constant 0 : index
    %1 = vector.load %arg2[%c0_1, %c0_2] : memref<1024x128xbf16, #tpu.memory_space<vmem>>, vector<1024x128xbf16>
    %cst = arith.constant dense<0.000000e+00> : vector<8x128xf32>
    %2 = tpu.matmul %0, %1, %cst {dimension_numbers = #tpu.dot_dimension_numbers<[1], [0], [0], [1], [0, 0, 1, 1], [], []>} : vector<8x1024xbf16>, vector<1024x128xbf16>, vector<8x128xf32> -> vector<8x128xf32>
    %c0_3 = arith.constant 0 : index
    %c0_4 = arith.constant 0 : index
    %3 = vector.load %arg3[%c0_3, %c0_4] : memref<1x128xf32, #tpu.memory_space<vmem>>, vector<1x128xf32>
    %4 = vector.broadcast %3 : vector<1x128xf32> to vector<8x128xf32>
    %5 = arith.addf %2, %4 : vector<8x128xf32>
    %cst_5 = arith.constant 0.000000e+00 : f32
    %6 = vector.broadcast %cst_5 : f32 to vector<8x128xf32>
    %7 = arith.maximumf %5, %6 : vector<8x128xf32>
    %8 = arith.truncf %7 : vector<8x128xf32> to vector<8x128xbf16>
    %c0_6 = arith.constant 0 : index
    %c0_7 = arith.constant 0 : index
    %9 = vector.load %arg4[%c0_6, %c0_7] : memref<128x128xbf16, #tpu.memory_space<vmem>>, vector<128x128xbf16>
    %cst_8 = arith.constant dense<0.000000e+00> : vector<8x128xf32>
    %10 = tpu.matmul %8, %9, %cst_8 {dimension_numbers = #tpu.dot_dimension_numbers<[1], [0], [0], [1], [0, 0, 1, 1], [], []>} : vector<8x128xbf16>, vector<128x128xbf16>, vector<8x128xf32> -> vector<8x128xf32>
    %c0_9 = arith.constant 0 : index
    %c0_10 = arith.constant 0 : index
    %11 = vector.load %arg5[%c0_9, %c0_10] : memref<1x128xf32, #tpu.memory_space<vmem>>, vector<1x128xf32>
    %12 = vector.broadcast %11 : vector<1x128xf32> to vector<8x128xf32>
    %13 = arith.addf %10, %12 : vector<8x128xf32>
    %c0_11 = arith.constant 0 : index
    %c0_12 = arith.constant 0 : index
    %14 = vector.load %arg6[%c0_11, %c0_12] : memref<8x128xf32, #tpu.memory_space<vmem>>, vector<8x128xf32>
    tpu.vector_store %arg6[%c0_11, %c0_12], %13 {strides = array<i32>} : memref<8x128xf32, #tpu.memory_space<vmem>>, vector<8x128xf32>,
    return
  }
  func.func @transform_0(%arg0: i32) -> (i32, i32) {
    %c0_i32 = arith.constant 0 : i32
    %c0_i32_0 = arith.constant 0 : i32
    return %arg0, %c0_i32 : i32, i32
  }
  func.func @transform_1(%arg0: i32) -> (i32, i32) {
    %c0_i32 = arith.constant 0 : i32
    %c0_i32_0 = arith.constant 0 : i32
    %c0_i32_1 = arith.constant 0 : i32
    return %c0_i32, %c0_i32_0 : i32, i32
  }
  func.func @transform_2(%arg0: i32) -> (i32, i32) {
    %c0_i32 = arith.constant 0 : i32
    %c0_i32_0 = arith.constant 0 : i32
    %c0_i32_1 = arith.constant 0 : i32
    return %c0_i32, %c0_i32_0 : i32, i32
  }
  func.func @transform_3(%arg0: i32) -> (i32, i32) {
    %c0_i32 = arith.constant 0 : i32
    %c0_i32_0 = arith.constant 0 : i32
    %c0_i32_1 = arith.constant 0 : i32
    return %c0_i32, %c0_i32_0 : i32, i32
  }
  func.func @transform_4(%arg0: i32) -> (i32, i32) {
    %c0_i32 = arith.constant 0 : i32
    %c0_i32_0 = arith.constant 0 : i32
    %c0_i32_1 = arith.constant 0 : i32
    return %c0_i32, %c0_i32_0 : i32, i32
  }
  func.func @transform_5(%arg0: i32) -> (i32, i32) {
    %c0_i32 = arith.constant 0 : i32
    %c0_i32_0 = arith.constant 0 : i32
    return %arg0, %c0_i32 : i32, i32
  }
}

</mosaic_0001>

<llo_original>
// kernel: mlp_forward.1
$region0: #{mlp_forward.1}
  #allocation0 [shape = 'u32[]', space=smem, size = 0x4, offset = 0x4, fixed_abs, tag = 'smem constant byte address 0x4 - core index']
  #allocation1 [shape = 'u32[72,128]{1,0:T(1,128)}', space=vmem, size = 0x9000, scoped, tag = 'internal scratch']
  %s0 = inlined_call_operand.vmem [shape: bf16[8,1024], index: 0, kind: input, shape index: {}]
  %s1 = inlined_call_operand.vmem [shape: bf16[1024,128], index: 1, kind: input, shape index: {}]
  %s2 = inlined_call_operand.vmem [shape: f32[1,128], index: 2, kind: input, shape index: {}]
  %s3 = inlined_call_operand.vmem [shape: bf16[128,128], index: 3, kind: input, shape index: {}]
  %s4 = inlined_call_operand.vmem [shape: f32[1,128], index: 4, kind: input, shape index: {}]
  %s5 = inlined_call_operand.vmem [shape: f32[8,128], index: 5, kind: output, shape index: {}]
  %s6 = sld [smem:[#allocation0]]
  $region30: #{mlp_forward.1} parent=0
    _
  %s8 = ssub.s32 1, %s6
  %s9 = scalar_select 0, %s8, %s6
  // Predicated region
  $region2: #{mlp_forward.1} parent=0 // pred_check
    _
  $region3: #{mlp_forward.1} parent=0 // pred_check_branch
    %11 = sbr.rel (0) target = $region5
  $region4: #{mlp_forward.1} parent=0 // pred_region
    _
  $region5: #{mlp_forward.1} parent=0 // pred_fallthru
    _
  // Predicated region
  $region6: #{mlp_forward.1} parent=0 // pred_check
    _
  $region7: #{mlp_forward.1} parent=0 // pred_check_branch
    %13 = sbr.rel (0) target = $region9
  $region8: #{mlp_forward.1} parent=0 // pred_region
    _
  $region9: #{mlp_forward.1} parent=0 // pred_fallthru
    _
  // Predicated region
  $region10: #{mlp_forward.1} parent=0 // pred_check
    _
  $region11: #{mlp_forward.1} parent=0 // pred_check_branch
    %15 = sbr.rel (0) target = $region13
  $region12: #{mlp_forward.1} parent=0 // pred_region
    _
  $region13: #{mlp_forward.1} parent=0 // pred_fallthru
    _
  // Predicated region
  $region14: #{mlp_forward.1} parent=0 // pred_check
    _
  $region15: #{mlp_forward.1} parent=0 // pred_check_branch
    %17 = sbr.rel (0) target = $region17
  $region16: #{mlp_forward.1} parent=0 // pred_region
    _
  $region17: #{mlp_forward.1} parent=0 // pred_fallthru
    _
  // Predicated region
  $region18: #{mlp_forward.1} parent=0 // pred_check
    _
  $region19: #{mlp_forward.1} parent=0 // pred_check_branch
    %19 = sbr.rel (0) target = $region21
  $region20: #{mlp_forward.1} parent=0 // pred_region
    _
  $region21: #{mlp_forward.1} parent=0 // pred_fallthru
    _
  %v20 = vld [vmem:[%s0] sm:$0xff]
  %v21 = vld [vmem:[%s0 + $0x8] sm:$0xff]
  %v22 = vld [vmem:[%s0 + $0x10] sm:$0xff]
  %v23 = vld [vmem:[%s0 + $0x18] sm:$0xff]
  %v24 = vld [vmem:[%s1] sm:$0xf]
  %v25 = vld [vmem:[%s1 + $0x4] sm:$0xf]
  %v26 = vld [vmem:[%s1 + $0x8] sm:$0xf]
  %v27 = vld [vmem:[%s1 + $0xc] sm:$0xf]
  %v28 = vld [vmem:[%s1 + $0x10] sm:$0xf]
  %v29 = vld [vmem:[%s1 + $0x14] sm:$0xf]
  %v30 = vld [vmem:[%s1 + $0x18] sm:$0xf]
  %v31 = vld [vmem:[%s1 + $0x1c] sm:$0xf]
  %v32 = vld [vmem:[%s1 + $0x20] sm:$0xf]
  %v33 = vld [vmem:[%s1 + $0x24] sm:$0xf]
  %v34 = vld [vmem:[%s1 + $0x28] sm:$0xf]
  %v35 = vld [vmem:[%s1 + $0x2c] sm:$0xf]
  %v36 = vld [vmem:[%s1 + $0x30] sm:$0xf]
  %v37 = vld [vmem:[%s1 + $0x34] sm:$0xf]
  %v38 = vld [vmem:[%s1 + $0x38] sm:$0xf]
  %v39 = vld [vmem:[%s1 + $0x3c] sm:$0xf]
  %v40 = vld [vmem:[%s1 + $0x40] sm:$0xf]
  %v41 = vld [vmem:[%s1 + $0x44] sm:$0xf]
  %v42 = vld [vmem:[%s1 + $0x48] sm:$0xf]
  %v43 = vld [vmem:[%s1 + $0x4c] sm:$0xf]
  %v44 = vld [vmem:[%s1 + $0x50] sm:$0xf]
  %v45 = vld [vmem:[%s1 + $0x54] sm:$0xf]
  %v46 = vld [vmem:[%s1 + $0x58] sm:$0xf]
  %v47 = vld [vmem:[%s1 + $0x5c] sm:$0xf]
  %v48 = vld [vmem:[%s1 + $0x60] sm:$0xf]
  %v49 = vld [vmem:[%s1 + $0x64] sm:$0xf]
  %v50 = vld [vmem:[%s1 + $0x68] sm:$0xf]
  %v51 = vld [vmem:[%s1 + $0x6c] sm:$0xf]
  %v52 = vld [vmem:[%s1 + $0x70] sm:$0xf]
  %v53 = vld [vmem:[%s1 + $0x74] sm:$0xf]
  %v54 = vld [vmem:[%s1 + $0x78] sm:$0xf]
  %v55 = vld [vmem:[%s1 + $0x7c] sm:$0xf]
  %v56 = vld [vmem:[%s1 + $0x80] sm:$0xf]
  %v57 = vld [vmem:[%s1 + $0x84] sm:$0xf]
  %v58 = vld [vmem:[%s1 + $0x88] sm:$0xf]
  %v59 = vld [vmem:[%s1 + $0x8c] sm:$0xf]
  %v60 = vld [vmem:[%s1 + $0x90] sm:$0xf]
  %v61 = vld [vmem:[%s1 + $0x94] sm:$0xf]
  %v62 = vld [vmem:[%s1 + $0x98] sm:$0xf]
  %v63 = vld [vmem:[%s1 + $0x9c] sm:$0xf]
  %v64 = vld [vmem:[%s1 + $0xa0] sm:$0xf]
  %v65 = vld [vmem:[%s1 + $0xa4] sm:$0xf]
  %v66 = vld [vmem:[%s1 + $0xa8] sm:$0xf]
  %v67 = vld [vmem:[%s1 + $0xac] sm:$0xf]
  %v68 = vld [vmem:[%s1 + $0xb0] sm:$0xf]
  %v69 = vld [vmem:[%s1 + $0xb4] sm:$0xf]
  %v70 = vld [vmem:[%s1 + $0xb8] sm:$0xf]
  %v71 = vld [vmem:[%s1 + $0xbc] sm:$0xf]
  %v72 = vld [vmem:[%s1 + $0xc0] sm:$0xf]
  %v73 = vld [vmem:[%s1 + $0xc4] sm:$0xf]
  %v74 = vld [vmem:[%s1 + $0xc8] sm:$0xf]
  %v75 = vld [vmem:[%s1 + $0xcc] sm:$0xf]
  %v76 = vld [vmem:[%s1 + $0xd0] sm:$0xf]
  %v77 = vld [vmem:[%s1 + $0xd4] sm:$0xf]
  %v78 = vld [vmem:[%s1 + $0xd8] sm:$0xf]
  %v79 = vld [vmem:[%s1 + $0xdc] sm:$0xf]
  %v80 = vld [vmem:[%s1 + $0xe0] sm:$0xf]
  %v81 = vld [vmem:[%s1 + $0xe4] sm:$0xf]
  %v82 = vld [vmem:[%s1 + $0xe8] sm:$0xf]
  %v83 = vld [vmem:[%s1 + $0xec] sm:$0xf]
  %v84 = vld [vmem:[%s1 + $0xf0] sm:$0xf]
  %v85 = vld [vmem:[%s1 + $0xf4] sm:$0xf]
  %v86 = vld [vmem:[%s1 + $0xf8] sm:$0xf]
  %v87 = vld [vmem:[%s1 + $0xfc] sm:$0xf]
  %v88 = vld [vmem:[%s1 + $0x100] sm:$0xf]
  %v89 = vld [vmem:[%s1 + $0x104] sm:$0xf]
  %v90 = vld [vmem:[%s1 + $0x108] sm:$0xf]
  %v91 = vld [vmem:[%s1 + $0x10c] sm:$0xf]
  %v92 = vld [vmem:[%s1 + $0x110] sm:$0xf]
  %v93 = vld [vmem:[%s1 + $0x114] sm:$0xf]
  %v94 = vld [vmem:[%s1 + $0x118] sm:$0xf]
  %v95 = vld [vmem:[%s1 + $0x11c] sm:$0xf]
  %v96 = vld [vmem:[%s1 + $0x120] sm:$0xf]
  %v97 = vld [vmem:[%s1 + $0x124] sm:$0xf]
  %v98 = vld [vmem:[%s1 + $0x128] sm:$0xf]
  %v99 = vld [vmem:[%s1 + $0x12c] sm:$0xf]
  %v100 = vld [vmem:[%s1 + $0x130] sm:$0xf]
  %v101 = vld [vmem:[%s1 + $0x134] sm:$0xf]
  %v102 = vld [vmem:[%s1 + $0x138] sm:$0xf]
  %v103 = vld [vmem:[%s1 + $0x13c] sm:$0xf]
  %v104 = vld [vmem:[%s1 + $0x140] sm:$0xf]
  %v105 = vld [vmem:[%s1 + $0x144] sm:$0xf]
  %v106 = vld [vmem:[%s1 + $0x148] sm:$0xf]
  %v107 = vld [vmem:[%s1 + $0x14c] sm:$0xf]
  %v108 = vld [vmem:[%s1 + $0x150] sm:$0xf]
  %v109 = vld [vmem:[%s1 + $0x154] sm:$0xf]
  %v110 = vld [vmem:[%s1 + $0x158] sm:$0xf]
  %v111 = vld [vmem:[%s1 + $0x15c] sm:$0xf]
  %v112 = vld [vmem:[%s1 + $0x160] sm:$0xf]
  %v113 = vld [vmem:[%s1 + $0x164] sm:$0xf]
  %v114 = vld [vmem:[%s1 + $0x168] sm:$0xf]
  %v115 = vld [vmem:[%s1 + $0x16c] sm:$0xf]
  %v116 = vld [vmem:[%s1 + $0x170] sm:$0xf]
  %v117 = vld [vmem:[%s1 + $0x174] sm:$0xf]
  %v118 = vld [vmem:[%s1 + $0x178] sm:$0xf]
  %v119 = vld [vmem:[%s1 + $0x17c] sm:$0xf]
  %v120 = vld [vmem:[%s1 + $0x180] sm:$0xf]
  %v121 = vld [vmem:[%s1 + $0x184] sm:$0xf]
  %v122 = vld [vmem:[%s1 + $0x188] sm:$0xf]
  %v123 = vld [vmem:[%s1 + $0x18c] sm:$0xf]
  %v124 = vld [vmem:[%s1 + $0x190] sm:$0xf]
  %v125 = vld [vmem:[%s1 + $0x194] sm:$0xf]
  %v126 = vld [vmem:[%s1 + $0x198] sm:$0xf]
  %v127 = vld [vmem:[%s1 + $0x19c] sm:$0xf]
  %v128 = vld [vmem:[%s1 + $0x1a0] sm:$0xf]
  %v129 = vld [vmem:[%s1 + $0x1a4] sm:$0xf]
  %v130 = vld [vmem:[%s1 + $0x1a8] sm:$0xf]
  %v131 = vld [vmem:[%s1 + $0x1ac] sm:$0xf]
  %v132 = vld [vmem:[%s1 + $0x1b0] sm:$0xf]
  %v133 = vld [vmem:[%s1 + $0x1b4] sm:$0xf]
  %v134 = vld [vmem:[%s1 + $0x1b8] sm:$0xf]
  %v135 = vld [vmem:[%s1 + $0x1bc] sm:$0xf]
  %v136 = vld [vmem:[%s1 + $0x1c0] sm:$0xf]
  %v137 = vld [vmem:[%s1 + $0x1c4] sm:$0xf]
  %v138 = vld [vmem:[%s1 + $0x1c8] sm:$0xf]
  %v139 = vld [vmem:[%s1 + $0x1cc] sm:$0xf]
  %v140 = vld [vmem:[%s1 + $0x1d0] sm:$0xf]
  %v141 = vld [vmem:[%s1 + $0x1d4] sm:$0xf]
  %v142 = vld [vmem:[%s1 + $0x1d8] sm:$0xf]
  %v143 = vld [vmem:[%s1 + $0x1dc] sm:$0xf]
  %v144 = vld [vmem:[%s1 + $0x1e0] sm:$0xf]
  %v145 = vld [vmem:[%s1 + $0x1e4] sm:$0xf]
  %v146 = vld [vmem:[%s1 + $0x1e8] sm:$0xf]
  %v147 = vld [vmem:[%s1 + $0x1ec] sm:$0xf]
  %v148 = vld [vmem:[%s1 + $0x1f0] sm:$0xf]
  %v149 = vld [vmem:[%s1 + $0x1f4] sm:$0xf]
  %v150 = vld [vmem:[%s1 + $0x1f8] sm:$0xf]
  %v151 = vld [vmem:[%s1 + $0x1fc] sm:$0xf]
  %v152 = vld [vmem:[%s2] sm:$0x1]
  %v154 = vperm.slane %v152, 0
  %v160 = vunpack.c.l.b16 %v20
  %v161 = vunpack.c.h.b16 %v20
  %v162 = vunpack.c.l.b16 %v21
  %v163 = vunpack.c.h.b16 %v21
  %v164 = vunpack.c.l.b16 %v22
  %v165 = vunpack.c.h.b16 %v22
  %v166 = vunpack.c.l.b16 %v23
  %v167 = vunpack.c.h.b16 %v23
  %v168 = vpack.c.b16 %v160, %v160
  %v169 = vpack.c.b16 %v161, %v161
  %v170 = vpack.c.b16 %v162, %v162
  %v171 = vpack.c.b16 %v163, %v163
  %v172 = vpack.c.b16 %v164, %v164
  %v173 = vpack.c.b16 %v165, %v165
  %v174 = vpack.c.b16 %v166, %v166
  %v175 = vpack.c.b16 %v167, %v167
  %v312 = vunpack.c.l.b16 %v24
  %v313 = vunpack.c.l.b16 %v25
  %v314 = vunpack.c.l.b16 %v26
  %v315 = vunpack.c.l.b16 %v27
  %v316 = vunpack.c.l.b16 %v28
  %v317 = vunpack.c.l.b16 %v29
  %v318 = vunpack.c.l.b16 %v30
  %v319 = vunpack.c.l.b16 %v31
  %v320 = vunpack.c.l.b16 %v32
  %v321 = vunpack.c.l.b16 %v33
  %v322 = vunpack.c.l.b16 %v34
  %v323 = vunpack.c.l.b16 %v35
  %v324 = vunpack.c.l.b16 %v36
  %v325 = vunpack.c.l.b16 %v37
  %v326 = vunpack.c.l.b16 %v38
  %v327 = vunpack.c.l.b16 %v39
  %v328 = vunpack.c.l.b16 %v40
  %v329 = vunpack.c.l.b16 %v41
  %v330 = vunpack.c.l.b16 %v42
  %v331 = vunpack.c.l.b16 %v43
  %v332 = vunpack.c.l.b16 %v44
  %v333 = vunpack.c.l.b16 %v45
  %v334 = vunpack.c.l.b16 %v46
  %v335 = vunpack.c.l.b16 %v47
  %v336 = vunpack.c.l.b16 %v48
  %v337 = vunpack.c.l.b16 %v49
  %v338 = vunpack.c.l.b16 %v50
  %v339 = vunpack.c.l.b16 %v51
  %v340 = vunpack.c.l.b16 %v52
  %v341 = vunpack.c.l.b16 %v53
  %v342 = vunpack.c.l.b16 %v54
  %v343 = vunpack.c.l.b16 %v55
  %v344 = vunpack.c.l.b16 %v56
  %v345 = vunpack.c.l.b16 %v57
  %v346 = vunpack.c.l.b16 %v58
  %v347 = vunpack.c.l.b16 %v59
  %v348 = vunpack.c.l.b16 %v60
  %v349 = vunpack.c.l.b16 %v61
  %v350 = vunpack.c.l.b16 %v62
  %v351 = vunpack.c.l.b16 %v63
  %v352 = vunpack.c.l.b16 %v64
  %v353 = vunpack.c.l.b16 %v65
  %v354 = vunpack.c.l.b16 %v66
  %v355 = vunpack.c.l.b16 %v67
  %v356 = vunpack.c.l.b16 %v68
  %v357 = vunpack.c.l.b16 %v69
  %v358 = vunpack.c.l.b16 %v70
  %v359 = vunpack.c.l.b16 %v71
  %v360 = vunpack.c.l.b16 %v72
  %v361 = vunpack.c.l.b16 %v73
  %v362 = vunpack.c.l.b16 %v74
  %v363 = vunpack.c.l.b16 %v75
  %v364 = vunpack.c.l.b16 %v76
  %v365 = vunpack.c.l.b16 %v77
  %v366 = vunpack.c.l.b16 %v78
  %v367 = vunpack.c.l.b16 %v79
  %v368 = vunpack.c.l.b16 %v80
  %v369 = vunpack.c.l.b16 %v81
  %v370 = vunpack.c.l.b16 %v82
  %v371 = vunpack.c.l.b16 %v83
  %v372 = vunpack.c.l.b16 %v84
  %v373 = vunpack.c.l.b16 %v85
  %v374 = vunpack.c.l.b16 %v86
  %v375 = vunpack.c.l.b16 %v87
  %v376 = vunpack.c.l.b16 %v88
  %v377 = vunpack.c.l.b16 %v89
  %v378 = vunpack.c.l.b16 %v90
  %v379 = vunpack.c.l.b16 %v91
  %v380 = vunpack.c.l.b16 %v92
  %v381 = vunpack.c.l.b16 %v93
  %v382 = vunpack.c.l.b16 %v94
  %v383 = vunpack.c.l.b16 %v95
  %v384 = vunpack.c.l.b16 %v96
  %v385 = vunpack.c.l.b16 %v97
  %v386 = vunpack.c.l.b16 %v98
  %v387 = vunpack.c.l.b16 %v99
  %v388 = vunpack.c.l.b16 %v100
  %v389 = vunpack.c.l.b16 %v101
  %v390 = vunpack.c.l.b16 %v102
  %v391 = vunpack.c.l.b16 %v103
  %v392 = vunpack.c.l.b16 %v104
  %v393 = vunpack.c.l.b16 %v105
  %v394 = vunpack.c.l.b16 %v106
  %v395 = vunpack.c.l.b16 %v107
  %v396 = vunpack.c.l.b16 %v108
  %v397 = vunpack.c.l.b16 %v109
  %v398 = vunpack.c.l.b16 %v110
  %v399 = vunpack.c.l.b16 %v111
  %v400 = vunpack.c.l.b16 %v112
  %v401 = vunpack.c.l.b16 %v113
  %v402 = vunpack.c.l.b16 %v114
  %v403 = vunpack.c.l.b16 %v115
  %v404 = vunpack.c.l.b16 %v116
  %v405 = vunpack.c.l.b16 %v117
  %v406 = vunpack.c.l.b16 %v118
  %v407 = vunpack.c.l.b16 %v119
  %v408 = vunpack.c.l.b16 %v120
  %v409 = vunpack.c.l.b16 %v121
  %v410 = vunpack.c.l.b16 %v122
  %v411 = vunpack.c.l.b16 %v123
  %v412 = vunpack.c.l.b16 %v124
  %v413 = vunpack.c.l.b16 %v125
  %v414 = vunpack.c.l.b16 %v126
  %v415 = vunpack.c.l.b16 %v127
  %v416 = vunpack.c.l.b16 %v128
  %v417 = vunpack.c.l.b16 %v129
  %v418 = vunpack.c.l.b16 %v130
  %v419 = vunpack.c.l.b16 %v131
  %v420 = vunpack.c.l.b16 %v132
  %v421 = vunpack.c.l.b16 %v133
  %v422 = vunpack.c.l.b16 %v134
  %v423 = vunpack.c.l.b16 %v135
  %v424 = vunpack.c.l.b16 %v136
  %v425 = vunpack.c.l.b16 %v137
  %v426 = vunpack.c.l.b16 %v138
  %v427 = vunpack.c.l.b16 %v139
  %v428 = vunpack.c.l.b16 %v140
  %v429 = vunpack.c.l.b16 %v141
  %v430 = vunpack.c.l.b16 %v142
  %v431 = vunpack.c.l.b16 %v143
  %v432 = vunpack.c.l.b16 %v144
  %v433 = vunpack.c.l.b16 %v145
  %v434 = vunpack.c.l.b16 %v146
  %v435 = vunpack.c.l.b16 %v147
  %v436 = vunpack.c.l.b16 %v148
  %v437 = vunpack.c.l.b16 %v149
  %v438 = vunpack.c.l.b16 %v150
  %v439 = vunpack.c.l.b16 %v151
  %v440 = vpack.c.b16 %v313, %v312
  %v441 = vpack.c.b16 %v315, %v314
  %v442 = vpack.c.b16 %v317, %v316
  %v443 = vpack.c.b16 %v319, %v318
  %v444 = vpack.c.b16 %v321, %v320
  %v445 = vpack.c.b16 %v323, %v322
  %v446 = vpack.c.b16 %v325, %v324
  %v447 = vpack.c.b16 %v327, %v326
  %v448 = vpack.c.b16 %v329, %v328
  %v449 = vpack.c.b16 %v331, %v330
  %v450 = vpack.c.b16 %v333, %v332
  %v451 = vpack.c.b16 %v335, %v334
  %v452 = vpack.c.b16 %v337, %v336
  %v453 = vpack.c.b16 %v339, %v338
  %v454 = vpack.c.b16 %v341, %v340
  %v455 = vpack.c.b16 %v343, %v342
  %v456 = vpack.c.b16 %v345, %v344
  %v457 = vpack.c.b16 %v347, %v346
  %v458 = vpack.c.b16 %v349, %v348
  %v459 = vpack.c.b16 %v351, %v350
  %v460 = vpack.c.b16 %v353, %v352
  %v461 = vpack.c.b16 %v355, %v354
  %v462 = vpack.c.b16 %v357, %v356
  %v463 = vpack.c.b16 %v359, %v358
  %v464 = vpack.c.b16 %v361, %v360
  %v465 = vpack.c.b16 %v363, %v362
  %v466 = vpack.c.b16 %v365, %v364
  %v467 = vpack.c.b16 %v367, %v366
  %v468 = vpack.c.b16 %v369, %v368
  %v469 = vpack.c.b16 %v371, %v370
  %v470 = vpack.c.b16 %v373, %v372
  %v471 = vpack.c.b16 %v375, %v374
  %v472 = vpack.c.b16 %v377, %v376
  %v473 = vpack.c.b16 %v379, %v378
  %v474 = vpack.c.b16 %v381, %v380
  %v475 = vpack.c.b16 %v383, %v382
  %v476 = vpack.c.b16 %v385, %v384
  %v477 = vpack.c.b16 %v387, %v386
  %v478 = vpack.c.b16 %v389, %v388
  %v479 = vpack.c.b16 %v391, %v390
  %v480 = vpack.c.b16 %v393, %v392
  %v481 = vpack.c.b16 %v395, %v394
  %v482 = vpack.c.b16 %v397, %v396
  %v483 = vpack.c.b16 %v399, %v398
  %v484 = vpack.c.b16 %v401, %v400
  %v485 = vpack.c.b16 %v403, %v402
  %v486 = vpack.c.b16 %v405, %v404
  %v487 = vpack.c.b16 %v407, %v406
  %v488 = vpack.c.b16 %v409, %v408
  %v489 = vpack.c.b16 %v411, %v410
  %v490 = vpack.c.b16 %v413, %v412
  %v491 = vpack.c.b16 %v415, %v414
  %v492 = vpack.c.b16 %v417, %v416
  %v493 = vpack.c.b16 %v419, %v418
  %v494 = vpack.c.b16 %v421, %v420
  %v495 = vpack.c.b16 %v423, %v422
  %v496 = vpack.c.b16 %v425, %v424
  %v497 = vpack.c.b16 %v427, %v426
  %v498 = vpack.c.b16 %v429, %v428
  %v499 = vpack.c.b16 %v431, %v430
  %v500 = vpack.c.b16 %v433, %v432
  %v501 = vpack.c.b16 %v435, %v434
  %v502 = vpack.c.b16 %v437, %v436
  %v503 = vpack.c.b16 %v439, %v438
  %568 = vmatpush.bf16.msra.mxu0 %v447
  %569 = vmatpush.bf16.msra.mxu0 %v446
  %570 = vmatpush.bf16.msra.mxu0 %v445
  %571 = vmatpush.bf16.msra.mxu0 %v444
  %572 = vmatpush.bf16.msra.mxu0 %v443
  %573 = vmatpush.bf16.msra.mxu0 %v442
  %574 = vmatpush.bf16.msra.mxu0 %v441
  %575 = vmatpush.bf16.msra.mxu0 %v440
  %576 = vmatmul.bf16.gmra.mxu0 %v168
  %v577 = vpop.f32.mrf.mxu0
  %v578 = vadd.f32 %v154, %v577
  %v579 = vpop.f32.mrf.mxu0
  %580 = vdwg.mxu0
  %581 = vmatpush.bf16.msra.mxu0 %v455
  %582 = vmatpush.bf16.msra.mxu0 %v454
  %583 = vmatpush.bf16.msra.mxu0 %v453
  %584 = vmatpush.bf16.msra.mxu0 %v452
  %585 = vmatpush.bf16.msra.mxu0 %v451
  %586 = vmatpush.bf16.msra.mxu0 %v450
  %587 = vmatpush.bf16.msra.mxu0 %v449
  %588 = vmatpush.bf16.msra.mxu0 %v448
  %589 = vmatmul.bf16.gmra.mxu0 %v169
  %v590 = vpop.f32.mrf.mxu0
  %v591 = vadd.f32 %v578, %v590
  %v592 = vpop.f32.mrf.mxu0
  %593 = vdwg.mxu0
  %594 = vmatpush.bf16.msra.mxu0 %v463
  %595 = vmatpush.bf16.msra.mxu0 %v462
  %596 = vmatpush.bf16.msra.mxu0 %v461
  %597 = vmatpush.bf16.msra.mxu0 %v460
  %598 = vmatpush.bf16.msra.mxu0 %v459
  %599 = vmatpush.bf16.msra.mxu0 %v458
  %600 = vmatpush.bf16.msra.mxu0 %v457
  %601 = vmatpush.bf16.msra.mxu0 %v456
  %602 = vmatmul.bf16.gmra.mxu0 %v170
  %v603 = vpop.f32.mrf.mxu0
  %v604 = vadd.f32 %v591, %v603
  %v605 = vpop.f32.mrf.mxu0
  %606 = vdwg.mxu0
  %607 = vmatpush.bf16.msra.mxu0 %v471
  %608 = vmatpush.bf16.msra.mxu0 %v470
  %609 = vmatpush.bf16.msra.mxu0 %v469
  %610 = vmatpush.bf16.msra.mxu0 %v468
  %611 = vmatpush.bf16.msra.mxu0 %v467
  %612 = vmatpush.bf16.msra.mxu0 %v466
  %613 = vmatpush.bf16.msra.mxu0 %v465
  %614 = vmatpush.bf16.msra.mxu0 %v464
  %615 = vmatmul.bf16.gmra.mxu0 %v171
  %v616 = vpop.f32.mrf.mxu0
  %v617 = vadd.f32 %v604, %v616
  %v618 = vpop.f32.mrf.mxu0
  %619 = vdwg.mxu0
  %620 = vmatpush.bf16.msra.mxu0 %v479
  %621 = vmatpush.bf16.msra.mxu0 %v478
  %622 = vmatpush.bf16.msra.mxu0 %v477
  %623 = vmatpush.bf16.msra.mxu0 %v476
  %624 = vmatpush.bf16.msra.mxu0 %v475
  %625 = vmatpush.bf16.msra.mxu0 %v474
  %626 = vmatpush.bf16.msra.mxu0 %v473
  %627 = vmatpush.bf16.msra.mxu0 %v472
  %628 = vmatmul.bf16.gmra.mxu0 %v172
  %v629 = vpop.f32.mrf.mxu0
  %v630 = vadd.f32 %v617, %v629
  %v631 = vpop.f32.mrf.mxu0
  %632 = vdwg.mxu0
  %633 = vmatpush.bf16.msra.mxu0 %v487
  %634 = vmatpush.bf16.msra.mxu0 %v486
  %635 = vmatpush.bf16.msra.mxu0 %v485
  %636 = vmatpush.bf16.msra.mxu0 %v484
  %637 = vmatpush.bf16.msra.mxu0 %v483
  %638 = vmatpush.bf16.msra.mxu0 %v482
  %639 = vmatpush.bf16.msra.mxu0 %v481
  %640 = vmatpush.bf16.msra.mxu0 %v480
  %641 = vmatmul.bf16.gmra.mxu0 %v173
  %v642 = vpop.f32.mrf.mxu0
  %v643 = vadd.f32 %v630, %v642
  %v644 = vpop.f32.mrf.mxu0
  %645 = vdwg.mxu0
  %646 = vmatpush.bf16.msra.mxu0 %v495
  %647 = vmatpush.bf16.msra.mxu0 %v494
  %648 = vmatpush.bf16.msra.mxu0 %v493
  %649 = vmatpush.bf16.msra.mxu0 %v492
  %650 = vmatpush.bf16.msra.mxu0 %v491
  %651 = vmatpush.bf16.msra.mxu0 %v490
  %652 = vmatpush.bf16.msra.mxu0 %v489
  %653 = vmatpush.bf16.msra.mxu0 %v488
  %654 = vmatmul.bf16.gmra.mxu0 %v174
  %v655 = vpop.f32.mrf.mxu0
  %v656 = vadd.f32 %v643, %v655
  %v657 = vpop.f32.mrf.mxu0
  %658 = vdwg.mxu0
  %659 = vmatpush.bf16.msra.mxu0 %v503
  %660 = vmatpush.bf16.msra.mxu0 %v502
  %661 = vmatpush.bf16.msra.mxu0 %v501
  %662 = vmatpush.bf16.msra.mxu0 %v500
  %663 = vmatpush.bf16.msra.mxu0 %v499
  %664 = vmatpush.bf16.msra.mxu0 %v498
  %665 = vmatpush.bf16.msra.mxu0 %v497
  %666 = vmatpush.bf16.msra.mxu0 %v496
  %667 = vmatmul.bf16.gmra.mxu0 %v175
  %v668 = vpop.f32.mrf.mxu0
  %v669 = vadd.f32 %v656, %v668
  %v670 = vpop.f32.mrf.mxu0
  %671 = vdwg.mxu0
  %v672 = vmax.f32 %v669, 0.0
  %v673 = vpack.c.bf16 %v672, %v672
  %v674 = vld [vmem:[%s3] sm:$0xf]
  %v675 = vld [vmem:[%s3 + $0x4] sm:$0xf]
  %v676 = vld [vmem:[%s3 + $0x8] sm:$0xf]
  %v677 = vld [vmem:[%s3 + $0xc] sm:$0xf]
  %v678 = vld [vmem:[%s3 + $0x10] sm:$0xf]
  %v679 = vld [vmem:[%s3 + $0x14] sm:$0xf]
  %v680 = vld [vmem:[%s3 + $0x18] sm:$0xf]
  %v681 = vld [vmem:[%s3 + $0x1c] sm:$0xf]
  %v682 = vld [vmem:[%s3 + $0x20] sm:$0xf]
  %v683 = vld [vmem:[%s3 + $0x24] sm:$0xf]
  %v684 = vld [vmem:[%s3 + $0x28] sm:$0xf]
  %v685 = vld [vmem:[%s3 + $0x2c] sm:$0xf]
  %v686 = vld [vmem:[%s3 + $0x30] sm:$0xf]
  %v687 = vld [vmem:[%s3 + $0x34] sm:$0xf]
  %v688 = vld [vmem:[%s3 + $0x38] sm:$0xf]
  %v689 = vld [vmem:[%s3 + $0x3c] sm:$0xf]
  %v690 = vld [vmem:[%s4] sm:$0x1]
  %v692 = vperm.slane %v690, 0
  %v710 = vunpack.c.l.b16 %v674
  %v711 = vunpack.c.l.b16 %v675
  %v712 = vunpack.c.l.b16 %v676
  %v713 = vunpack.c.l.b16 %v677
  %v714 = vunpack.c.l.b16 %v678
  %v715 = vunpack.c.l.b16 %v679
  %v716 = vunpack.c.l.b16 %v680
  %v717 = vunpack.c.l.b16 %v681
  %v718 = vunpack.c.l.b16 %v682
  %v719 = vunpack.c.l.b16 %v683
  %v720 = vunpack.c.l.b16 %v684
  %v721 = vunpack.c.l.b16 %v685
  %v722 = vunpack.c.l.b16 %v686
  %v723 = vunpack.c.l.b16 %v687
  %v724 = vunpack.c.l.b16 %v688
  %v725 = vunpack.c.l.b16 %v689
  %v726 = vpack.c.b16 %v711, %v710
  %v727 = vpack.c.b16 %v713, %v712
  %v728 = vpack.c.b16 %v715, %v714
  %v729 = vpack.c.b16 %v717, %v716
  %v730 = vpack.c.b16 %v719, %v718
  %v731 = vpack.c.b16 %v721, %v720
  %v732 = vpack.c.b16 %v723, %v722
  %v733 = vpack.c.b16 %v725, %v724
  %742 = vmatpush.bf16.msra.mxu0 %v733
  %743 = vmatpush.bf16.msra.mxu0 %v732
  %744 = vmatpush.bf16.msra.mxu0 %v731
  %745 = vmatpush.bf16.msra.mxu0 %v730
  %746 = vmatpush.bf16.msra.mxu0 %v729
  %747 = vmatpush.bf16.msra.mxu0 %v728
  %748 = vmatpush.bf16.msra.mxu0 %v727
  %749 = vmatpush.bf16.msra.mxu0 %v726
  %750 = vmatmul.bf16.gmra.mxu0 %v673
  %v751 = vpop.f32.mrf.mxu0
  %v752 = vadd.f32 %v692, %v751
  %v753 = vpop.f32.mrf.mxu0
  %754 = vdwg.mxu0
  %755 = vst [vmem:[%s5] sm:$0xff] %v752
  // Predicated region
  $region22: #{mlp_forward.1} parent=0 // pred_check
    _
  $region23: #{mlp_forward.1} parent=0 // pred_check_branch
    %757 = sbr.rel (0) target = $region25
  $region24: #{mlp_forward.1} parent=0 // pred_region
    _
  $region25: #{mlp_forward.1} parent=0 // pred_fallthru
    _
  // Predicated region
  $region26: #{mlp_forward.1} parent=0 // pred_check
    _
  $region27: #{mlp_forward.1} parent=0 // pred_check_branch
    %759 = sbr.rel (0) target = $region29
  $region28: #{mlp_forward.1} parent=0 // pred_region
    _
  $region29: #{mlp_forward.1} parent=0 // pred_fallthru
    _

</llo_original>
